<compile_context>
chip_gen: v6e
topology: v6e:2x2x1
jax: 0.10.0
libtpu: 0.0.40
codegen_flags: <defaults>
</compile_context>

<pallas_src>
import functools

import jax
import jax.numpy as jnp
from jax.experimental import pallas as pl
from jax.experimental.pallas import tpu as pltpu

LEAKY_SLOPE = 0.01   # nn.LeakyReLU default
IN_EPS = 1e-5        # nn.InstanceNorm2d default eps (affine=False)
VMEM_LIMIT = 48 * 1024 * 1024   # stay under v7x's 64 MiB physical VMEM


def _round_up(v, m):
    return ((v + m - 1) // m) * m


# ----------------------------------------------------------------------------
# Kernel A: conv (as matmul) + bias + LeakyReLU, streaming over spatial tiles,
#           accumulating per-(sample, channel) sum and sum-of-squares.
# ----------------------------------------------------------------------------
def _conv_leaky_stats_kernel(patch_ref, w_ref, b_ref,
                             y_ref, sum_ref, sq_ref,
                             *, tile_m, m_valid, m_padded):
    m = pl.program_id(1)

    @pl.when(m == 0)
    def _():
        sum_ref[...] = jnp.zeros_like(sum_ref)
        sq_ref[...] = jnp.zeros_like(sq_ref)

    p = patch_ref[0]                       # (tile_m, K)  bf16
    w = w_ref[...]                         # (K, Cp)      bf16
    y = jnp.dot(p, w, preferred_element_type=jnp.float32) + b_ref[...]  # f32
    y = jnp.where(y > 0, y, LEAKY_SLOPE * y)

    if m_padded > m_valid:
        # zero out rows that only exist because of spatial padding so they do
        # not pollute the InstanceNorm statistics (m_valid is static).
        row = m * tile_m + jax.lax.broadcasted_iota(jnp.int32, (tile_m, 1), 0)
        y = jnp.where(row < m_valid, y, 0.0)

    y_ref[...] = y[None]
    sum_ref[...] += jnp.sum(y, axis=0, keepdims=True)[None]
    sq_ref[...] += jnp.sum(y * y, axis=0, keepdims=True)[None]


# ----------------------------------------------------------------------------
# Kernel B: apply InstanceNorm given the finished per-sample statistics.
# ----------------------------------------------------------------------------
def _instnorm_kernel(y_ref, sum_ref, sq_ref, o_ref, *, m_valid):
    y = y_ref[0]                           # (tile_m, Cp) f32
    s = sum_ref[0]                         # (1, Cp)
    ss = sq_ref[0]                         # (1, Cp)
    inv_n = 1.0 / float(m_valid)
    mean = s * inv_n
    var = jnp.maximum(ss * inv_n - mean * mean, 0.0)
    o_ref[...] = ((y - mean) * jax.lax.rsqrt(var + IN_EPS))[None]


# ----------------------------------------------------------------------------
# im2col for 3x3 / stride-2 / pad-1 (plain-JAX glue, bf16 in -> bf16 out).
# ----------------------------------------------------------------------------
def _im2col_s2p1(x_nhwc):
    n, h, w, c = x_nhwc.shape
    oh, ow = (h + 1) // 2, (w + 1) // 2
    xp = jnp.pad(x_nhwc, ((0, 0), (1, 1), (1, 1), (0, 0)))
    cols = []
    for kh in range(3):
        for kw in range(3):
            cols.append(xp[:, kh:kh + 2 * oh:2, kw:kw + 2 * ow:2, :])
    patches = jnp.stack(cols, axis=3)                 # (N, OH, OW, 9, C)
    return patches.reshape(n, oh * ow, 9 * c), oh, ow


def downsample_forward(x_nchw, w_oihw, bias, is_bn=True):
    """x_nchw: (N, Cin, H, W) f32; w_oihw: (Cout, Cin, 3, 3); bias: (Cout,)."""
    n, cin, h, w = x_nchw.shape
    cout = w_oihw.shape[0]

    # activations in NHWC; cast to bf16 before im2col to halve HBM bytes
    x_nhwc = jnp.transpose(x_nchw, (0, 2, 3, 1)).astype(jnp.bfloat16)
    patches, oh, ow = _im2col_s2p1(x_nhwc)            # (N, M, K) bf16
    m_valid = oh * ow
    k = patches.shape[-1]

    # lane-dense output channels
    cp = _round_up(cout, 128)
    # spatial tiling: multiple of 16 (bf16 sublane packing), capped for VMEM
    tile_m = min(512, _round_up(m_valid, 16))
    m_pad = _round_up(m_valid, tile_m)
    n_mt = m_pad // tile_m

    if m_pad != m_valid:
        patches = jnp.pad(patches, ((0, 0), (0, m_pad - m_valid), (0, 0)))

    # weight matrix with matching (kh, kw, cin) reduction ordering, bf16 + pad
    w_mat = jnp.transpose(w_oihw, (2, 3, 1, 0)).reshape(k, cout)
    w_mat = jnp.pad(w_mat, ((0, 0), (0, cp - cout))).astype(jnp.bfloat16)
    b_mat = jnp.pad(bias.reshape(1, cout).astype(jnp.float32),
                    ((0, 0), (0, cp - cout)))

    flops_a = 2 * n * m_pad * k * cp
    bytes_a = (n * m_pad * k * 2 + k * cp * 2 + cp * 4
               + n * m_pad * cp * 4 + 2 * n * cp * 4)

    y, ysum, ysq = pl.pallas_call(
        functools.partial(_conv_leaky_stats_kernel, tile_m=tile_m,
                          m_valid=m_valid, m_padded=m_pad),
        out_shape=(jax.ShapeDtypeStruct((n, m_pad, cp), jnp.float32),
                   jax.ShapeDtypeStruct((n, 1, cp), jnp.float32),
                   jax.ShapeDtypeStruct((n, 1, cp), jnp.float32)),
        grid_spec=pltpu.PrefetchScalarGridSpec(
            num_scalar_prefetch=0,
            grid=(n, n_mt),
            in_specs=[
                pl.BlockSpec((1, tile_m, k), lambda i, m: (i, m, 0)),
                pl.BlockSpec((k, cp), lambda i, m: (0, 0)),
                pl.BlockSpec((1, cp), lambda i, m: (0, 0)),
            ],
            out_specs=[
                pl.BlockSpec((1, tile_m, cp), lambda i, m: (i, m, 0)),
                pl.BlockSpec((1, 1, cp), lambda i, m: (i, 0, 0)),
                pl.BlockSpec((1, 1, cp), lambda i, m: (i, 0, 0)),
            ]),
        compiler_params=pltpu.CompilerParams(
            dimension_semantics=("parallel", "arbitrary"),
            vmem_limit_bytes=VMEM_LIMIT),
        cost_estimate=pl.CostEstimate(flops=flops_a, transcendentals=0,
                                      bytes_accessed=bytes_a),
    )(patches, w_mat, b_mat)

    if is_bn:
        bytes_b = 2 * n * m_pad * cp * 4 + 2 * n * cp * 4
        out = pl.pallas_call(
            functools.partial(_instnorm_kernel, m_valid=m_valid),
            out_shape=jax.ShapeDtypeStruct((n, m_pad, cp), jnp.float32),
            grid_spec=pltpu.PrefetchScalarGridSpec(
                num_scalar_prefetch=0,
                grid=(n, n_mt),
                in_specs=[
                    pl.BlockSpec((1, tile_m, cp), lambda i, m: (i, m, 0)),
                    pl.BlockSpec((1, 1, cp), lambda i, m: (i, 0, 0)),
                    pl.BlockSpec((1, 1, cp), lambda i, m: (i, 0, 0)),
                ],
                out_specs=pl.BlockSpec((1, tile_m, cp), lambda i, m: (i, m, 0))),
            compiler_params=pltpu.CompilerParams(
                dimension_semantics=("parallel", "parallel"),
                vmem_limit_bytes=VMEM_LIMIT),
            cost_estimate=pl.CostEstimate(flops=4 * n * m_pad * cp,
                                          transcendentals=n * n_mt * cp,
                                          bytes_accessed=bytes_b),
        )(y, ysum, ysq)
    else:
        out = y

    # drop spatial / channel padding, back to NCHW
    out = out[:, :m_valid, :cout].reshape(n, oh, ow, cout)
    return jnp.transpose(out, (0, 3, 1, 2))


if __name__ == "__main__":
    key = jax.random.PRNGKey(0)
    kx, kw, kb = jax.random.split(key, 3)

    N, Cin, H, W = 2, 4, 16, 16
    Cout = 8

    x = jax.random.normal(kx, (N, Cin, H, W), dtype=jnp.float32)

    fan_in = Cin * 3 * 3
    bound = 1.0 / (fan_in ** 0.5)
    conv_w = jax.random.uniform(kw, (Cout, Cin, 3, 3), jnp.float32, -bound, bound)
    conv_b = jax.random.uniform(kb, (Cout,), jnp.float32, -bound, bound)

    y_bn = downsample_forward(x, conv_w, conv_b, is_bn=True)
    y_nobn = downsample_forward(x, conv_w, conv_b, is_bn=False)
    jax.block_until_ready(y_bn)
    jax.block_until_ready(y_nobn)
    assert y_bn.shape == (N, Cout, H // 2, W // 2), y_bn.shape
    assert y_nobn.shape == (N, Cout, H // 2, W // 2), y_nobn.shape

    # reference with the same bf16 matmul inputs / f32 accumulation
    ref = jax.lax.conv_general_dilated(
        x.astype(jnp.bfloat16), conv_w.astype(jnp.bfloat16),
        window_strides=(2, 2), padding=((1, 1), (1, 1)),
        dimension_numbers=("NCHW", "OIHW", "NCHW"),
        preferred_element_type=jnp.float32)
    ref = ref + conv_b[None, :, None, None]
    ref = jnp.where(ref > 0, ref, LEAKY_SLOPE * ref)
    mean = jnp.mean(ref, axis=(2, 3), keepdims=True)
    var = jnp.mean((ref - mean) ** 2, axis=(2, 3), keepdims=True)
    ref_bn = (ref - mean) * jax.lax.rsqrt(var + IN_EPS)

    assert float(jnp.max(jnp.abs(y_nobn - ref))) < 5e-3
    assert float(jnp.max(jnp.abs(y_bn - ref_bn))) < 5e-3
    print("KERNEL_OK")
</pallas_src>

<mosaic_0001>
module attributes {stable_mosaic.version = 11 : i64} {
  func.func @_conv_leaky_stats_kernel(%arg0: i32, %arg1: i32, %arg2: memref<1x64x36xbf16, #tpu.memory_space<vmem>>, %arg3: memref<36x128xbf16, #tpu.memory_space<vmem>>, %arg4: memref<1x128xf32, #tpu.memory_space<vmem>>, %arg5: memref<1x64x128xf32, #tpu.memory_space<vmem>>, %arg6: memref<1x1x128xf32, #tpu.memory_space<vmem>>, %arg7: memref<1x1x128xf32, #tpu.memory_space<vmem>>) attributes {dimension_semantics = [#tpu.dimension_semantics<parallel>, #tpu.dimension_semantics<arbitrary>], iteration_bounds = array<i64: 2, 1>, scalar_prefetch = 0 : i64, scratch_operands = 0 : i64, tpu.core_type = #tpu.core_type<tc>, window_params = [{transform_indices = @transform_0, window_bounds = array<i64: 1, 64, 36>}, {pipeline_mode = #tpu.pipeline_mode<synchronous>, transform_indices = @transform_1, window_bounds = array<i64: 36, 128>}, {pipeline_mode = #tpu.pipeline_mode<synchronous>, transform_indices = @transform_2, window_bounds = array<i64: 1, 128>}, {transform_indices = @transform_3, window_bounds = array<i64: 1, 64, 128>}, {transform_indices = @transform_4, window_bounds = array<i64: 1, 1, 128>}, {transform_indices = @transform_5, window_bounds = array<i64: 1, 1, 128>}]} {
    %c0_i32 = arith.constant 0 : i32
    %0 = arith.cmpi eq, %arg1, %c0_i32 : i32
    %1 = arith.extui %0 : i1 to i32
    %c0_i32_0 = arith.constant 0 : i32
    %2 = arith.cmpi ne, %1, %c0_i32_0 : i32
    scf.if %2 {
      %cst_26 = arith.constant 0.000000e+00 : f32
      %30 = vector.broadcast %cst_26 : f32 to vector<1x1x128xf32>
      %c0_27 = arith.constant 0 : index
      %c0_28 = arith.constant 0 : index
      %c0_29 = arith.constant 0 : index
      %31 = vector.load %arg6[%c0_27, %c0_28, %c0_29] : memref<1x1x128xf32, #tpu.memory_space<vmem>>, vector<1x1x128xf32>
      tpu.vector_store %arg6[%c0_27, %c0_28, %c0_29], %30 {strides = array<i32>} : memref<1x1x128xf32, #tpu.memory_space<vmem>>, vector<1x1x128xf32>,
      %cst_30 = arith.constant 0.000000e+00 : f32
      %32 = vector.broadcast %cst_30 : f32 to vector<1x1x128xf32>
      %c0_31 = arith.constant 0 : index
      %c0_32 = arith.constant 0 : index
      %c0_33 = arith.constant 0 : index
      %33 = vector.load %arg7[%c0_31, %c0_32, %c0_33] : memref<1x1x128xf32, #tpu.memory_space<vmem>>, vector<1x1x128xf32>
      tpu.vector_store %arg7[%c0_31, %c0_32, %c0_33], %32 {strides = array<i32>} : memref<1x1x128xf32, #tpu.memory_space<vmem>>, vector<1x1x128xf32>,
    } else {
    }
    %c0 = arith.constant 0 : index
    %c0_1 = arith.constant 0 : index
    %c0_2 = arith.constant 0 : index
    %3 = vector.load %arg2[%c0, %c0_1, %c0_2] : memref<1x64x36xbf16, #tpu.memory_space<vmem>>, vector<1x64x36xbf16>
    %4 = vector.shape_cast %3 : vector<1x64x36xbf16> to vector<64x36xbf16>
    %c0_3 = arith.constant 0 : index
    %c0_4 = arith.constant 0 : index
    %5 = vector.load %arg3[%c0_3, %c0_4] : memref<36x128xbf16, #tpu.memory_space<vmem>>, vector<36x128xbf16>
    %cst = arith.constant dense<0.000000e+00> : vector<64x128xf32>
    %6 = tpu.matmul %4, %5, %cst {dimension_numbers = #tpu.dot_dimension_numbers<[1], [0], [0], [1], [0, 0, 1, 1], [], []>} : vector<64x36xbf16>, vector<36x128xbf16>, vector<64x128xf32> -> vector<64x128xf32>
    %c0_5 = arith.constant 0 : index
    %c0_6 = arith.constant 0 : index
    %7 = vector.load %arg4[%c0_5, %c0_6] : memref<1x128xf32, #tpu.memory_space<vmem>>, vector<1x128xf32>
    %8 = vector.broadcast %7 : vector<1x128xf32> to vector<64x128xf32>
    %9 = arith.addf %6, %8 : vector<64x128xf32>
    %cst_7 = arith.constant 0.000000e+00 : f32
    %10 = vector.broadcast %cst_7 : f32 to vector<64x128xf32>
    %11 = arith.cmpf ogt, %9, %10 : vector<64x128xf32>
    %cst_8 = arith.constant 0.00999999977 : f32
    %12 = vector.broadcast %cst_8 : f32 to vector<64x128xf32>
    %13 = arith.mulf %12, %9 : vector<64x128xf32>
    %14 = arith.select %11, %9, %13 : vector<64x128xi1>, vector<64x128xf32>
    %15 = vector.shape_cast %14 : vector<64x128xf32> to vector<1x64x128xf32>
    %c0_9 = arith.constant 0 : index
    %c0_10 = arith.constant 0 : index
    %c0_11 = arith.constant 0 : index
    %16 = vector.load %arg5[%c0_9, %c0_10, %c0_11] : memref<1x64x128xf32, #tpu.memory_space<vmem>>, vector<1x64x128xf32>
    tpu.vector_store %arg5[%c0_9, %c0_10, %c0_11], %15 {strides = array<i32>} : memref<1x64x128xf32, #tpu.memory_space<vmem>>, vector<1x64x128xf32>,
    %c0_12 = arith.constant 0 : index
    %c0_13 = arith.constant 0 : index
    %c0_14 = arith.constant 0 : index
    %17 = vector.load %arg6[%c0_12, %c0_13, %c0_14] : memref<1x1x128xf32, #tpu.memory_space<vmem>>, vector<1x1x128xf32>
    %cst_15 = arith.constant dense<0.000000e+00> : vector<128xf32>
    %18 = vector.multi_reduction <add>, %14, %cst_15 [0] : vector<64x128xf32> to vector<128xf32>
    %19 = vector.shape_cast %18 : vector<128xf32> to vector<1x128xf32>
    %20 = vector.shape_cast %19 : vector<1x128xf32> to vector<1x1x128xf32>
    %21 = arith.addf %17, %20 : vector<1x1x128xf32>
    %c0_16 = arith.constant 0 : index
    %c0_17 = arith.constant 0 : index
    %c0_18 = arith.constant 0 : index
    %22 = vector.load %arg6[%c0_16, %c0_17, %c0_18] : memref<1x1x128xf32, #tpu.memory_space<vmem>>, vector<1x1x128xf32>
    tpu.vector_store %arg6[%c0_16, %c0_17, %c0_18], %21 {strides = array<i32>} : memref<1x1x128xf32, #tpu.memory_space<vmem>>, vector<1x1x128xf32>,
    %c0_19 = arith.constant 0 : index
    %c0_20 = arith.constant 0 : index
    %c0_21 = arith.constant 0 : index
    %23 = vector.load %arg7[%c0_19, %c0_20, %c0_21] : memref<1x1x128xf32, #tpu.memory_space<vmem>>, vector<1x1x128xf32>
    %24 = arith.mulf %14, %14 : vector<64x128xf32>
    %cst_22 = arith.constant dense<0.000000e+00> : vector<128xf32>
    %25 = vector.multi_reduction <add>, %24, %cst_22 [0] : vector<64x128xf32> to vector<128xf32>
    %26 = vector.shape_cast %25 : vector<128xf32> to vector<1x128xf32>
    %27 = vector.shape_cast %26 : vector<1x128xf32> to vector<1x1x128xf32>
    %28 = arith.addf %23, %27 : vector<1x1x128xf32>
    %c0_23 = arith.constant 0 : index
    %c0_24 = arith.constant 0 : index
    %c0_25 = arith.constant 0 : index
    %29 = vector.load %arg7[%c0_23, %c0_24, %c0_25] : memref<1x1x128xf32, #tpu.memory_space<vmem>>, vector<1x1x128xf32>
    tpu.vector_store %arg7[%c0_23, %c0_24, %c0_25], %28 {strides = array<i32>} : memref<1x1x128xf32, #tpu.memory_space<vmem>>, vector<1x1x128xf32>,
    return
  }
  func.func @transform_0(%arg0: i32, %arg1: i32) -> (i32, i32, i32) {
    %c0_i32 = arith.constant 0 : i32
    %c0_i32_0 = arith.constant 0 : i32
    return %arg0, %arg1, %c0_i32 : i32, i32, i32
  }
  func.func @transform_1(%arg0: i32, %arg1: i32) -> (i32, i32) {
    %c0_i32 = arith.constant 0 : i32
    %c0_i32_0 = arith.constant 0 : i32
    %c0_i32_1 = arith.constant 0 : i32
    return %c0_i32, %c0_i32_0 : i32, i32
  }
  func.func @transform_2(%arg0: i32, %arg1: i32) -> (i32, i32) {
    %c0_i32 = arith.constant 0 : i32
    %c0_i32_0 = arith.constant 0 : i32
    %c0_i32_1 = arith.constant 0 : i32
    return %c0_i32, %c0_i32_0 : i32, i32
  }
  func.func @transform_3(%arg0: i32, %arg1: i32) -> (i32, i32, i32) {
    %c0_i32 = arith.constant 0 : i32
    %c0_i32_0 = arith.constant 0 : i32
    return %arg0, %arg1, %c0_i32 : i32, i32, i32
  }
  func.func @transform_4(%arg0: i32, %arg1: i32) -> (i32, i32, i32) {
    %c0_i32 = arith.constant 0 : i32
    %c0_i32_0 = arith.constant 0 : i32
    %c0_i32_1 = arith.constant 0 : i32
    return %arg0, %c0_i32, %c0_i32_0 : i32, i32, i32
  }
  func.func @transform_5(%arg0: i32, %arg1: i32) -> (i32, i32, i32) {
    %c0_i32 = arith.constant 0 : i32
    %c0_i32_0 = arith.constant 0 : i32
    %c0_i32_1 = arith.constant 0 : i32
    return %arg0, %c0_i32, %c0_i32_0 : i32, i32, i32
  }
}

</mosaic_0001>

<llo_original>
// kernel: tpu_custom_call.1
$region0: #{tpu_custom_call.1}
  #allocation0 [shape = 'u32[]', space=smem, size = 0x4, offset = 0x4, fixed_abs, tag = 'smem constant byte address 0x4 - core index']
  #allocation1 [shape = 'u32[144,128]{1,0:T(1,128)}', space=vmem, size = 0x12000, scoped, tag = 'internal scratch']
  %s0 = inlined_call_operand.vmem [shape: bf16[2,64,36], index: 0, kind: input, shape index: {}]
  %s1 = inlined_call_operand.vmem [shape: bf16[36,128], index: 1, kind: input, shape index: {}]
  %s2 = inlined_call_operand.vmem [shape: f32[1,128], index: 2, kind: input, shape index: {}]
  %s3 = inlined_call_operand.hbm [shape: f32[2,64,128], index: 3, kind: output, shape index: {0}]
  %s4 = inlined_call_operand.hbm [shape: f32[2,1,128], index: 4, kind: output, shape index: {1}]
  %s5 = inlined_call_operand.hbm [shape: f32[2,1,128], index: 5, kind: output, shape index: {2}]
  %6 = xla_tuple %s3, %s4, %s5
  %s7 = sld [smem:[#allocation0]]
  $region65: #{tpu_custom_call.1} parent=0
    _
  %s9 = ssub.s32 1, %s7
  %s10 = scalar_select 0, %s9, %s7
  $region1: #{tpu_custom_call.1} parent=0
    #allocation2 [shape = 'u8[65536]{0}', space=vmem, size = 0x10000, scoped, tag = 'output window, operand 0']
    #allocation3 [shape = 's32[2]{0}', space=sflag, size = 0x8, scoped, tag = 'scoped memory for tpu_custom_call.1']
    #allocation4 [shape = 'u8[1024]{0}', space=vmem, size = 0x400, scoped, tag = 'output window, operand 1']
    #allocation5 [shape = 's32[2]{0}', space=sflag, size = 0x8, scoped, tag = 'scoped memory for tpu_custom_call.1']
    #allocation6 [shape = 'u8[1024]{0}', space=vmem, size = 0x400, scoped, tag = 'output window, operand 2']
    %11 = vsyncpa [#allocation3], 0
    %s12 = scalar_lea.sflag [#allocation3], 1
    %13 = vsyncpa %s12, 0
    %14 = vsyncpa [#allocation5], 0
    %s15 = scalar_lea.sflag [#allocation5], 1
    %16 = vsyncpa %s15, 0
    loop: start=0, step=1, limit=4
    $region2: #{tpu_custom_call.1} parent=1 // loop_pre_header
      _
    $region3: #{tpu_custom_call.1} parent=1 // loop_header
      %s18 = sphi 0, %s22
      %p19 = scmp.ge.s32.totalorder %s18, 4
      %s25 = sphi 0, %s37
      %s26 = sphi 0, %s33
      %s27 = sphi 0, %s25
      %s28 = sphi 0, %s26
      %s29 = sphi 0, %s27
      %s30 = sphi 0, %s28
      %s42 = sphi 0, %s44
      %s45 = sphi 0, %s42
      %s46 = sphi 0, %s45
      %s62 = sphi 0, %s46
      %s66 = sphi 0, %s66
      %s68 = sphi 0, %s66
      %s69 = sphi 0, %s68
      %s83 = sphi 0, %s69
      %s87 = sphi 0, %s87
      %s89 = sphi 0, %s87
      %s90 = sphi 0, %s89
      %s104 = sphi 0, %s90
      %s112 = sphi 0, %s114
      %s115 = sphi 0, %s112
      %s116 = sphi 0, %s115
      %s132 = sphi 0, %s116
      %s138 = sphi 0, %s140
      %s141 = sphi 0, %s138
      %s142 = sphi 0, %s141
      %s158 = sphi 0, %s142
      %s164 = sphi 0, %s166
      %s167 = sphi 0, %s164
      %s168 = sphi 0, %s167
      %s184 = sphi 0, %s168
    $region4: #{tpu_custom_call.1} parent=1 // loop_header_branch
      %21 = sbr.rel (%p19) target = $region8
    $region5: #{tpu_custom_call.1} parent=1 // loop_body
      %s23 = ssub.s32 %s18, 1
      %s24 = ssub.s32 %s18, 2
      %s31 = sadd.s32 1, %s26
      %p32 = scmp.ge.s32.totalorder %s31, 1
      %s33 = scalar_select %p32, 0, %s31
      %s34 = sadd.s32 1, %s25
      %s35 = scalar_select %p32, %s34, %s25
      %p36 = scmp.ge.s32.totalorder %s35, 2
      %s37 = scalar_select %p36, 0, %s35
      %s38 = ssub.s32 %s25, %s37
      %s39 = ssub.s32 %s26, %s33
      %s40 = sor.u32 %s38, %s39
      %p41 = scmp.eq.s32.totalorder %s40, 0
      %s43 = sadd.s32 %s42, 1
      %s44 = scalar_select %p41, %s42, %s43
      %p47 = pneg %p41
      %p48 = scmp.eq.s32.totalorder %s18, 1
      %p49 = por %p47, %p48
      %p50 = scmp.ne.s32.totalorder %s42, %s45
      %p51 = scmp.eq.s32.totalorder %s18, 0
      %p52 = por %p50, %p51
      %p53 = scmp.ne.s32.totalorder %s42, %s45
      %p54 = scmp.eq.s32.totalorder %s23, 1
      %p55 = por %p53, %p54
      %p56 = scmp.ne.s32.totalorder %s45, %s46
      %p57 = scmp.eq.s32.totalorder %s23, 0
      %p58 = por %p56, %p57
      %p59 = scmp.ne.s32.totalorder %s45, %s46
      %p60 = scmp.eq.s32.totalorder %s24, 1
      %p61 = por %p59, %p60
      %p63 = scmp.ne.s32.totalorder %s46, %s62
      %p64 = scmp.eq.s32.totalorder %s24, 0
      %p65 = por %p63, %p64
      %s67 = sadd.s32 %s66, 1
      %p70 = scmp.eq.s32.totalorder %s18, 1
      %p71 = scmp.ne.s32.totalorder %s66, %s68
      %p72 = scmp.eq.s32.totalorder %s18, 0
      %p73 = por %p71, %p72
      %p74 = scmp.ne.s32.totalorder %s66, %s68
      %p75 = scmp.eq.s32.totalorder %s23, 1
      %p76 = por %p74, %p75
      %p77 = scmp.ne.s32.totalorder %s68, %s69
      %p78 = scmp.eq.s32.totalorder %s23, 0
      %p79 = por %p77, %p78
      %p80 = scmp.ne.s32.totalorder %s68, %s69
      %p81 = scmp.eq.s32.totalorder %s24, 1
      %p82 = por %p80, %p81
      %p84 = scmp.ne.s32.totalorder %s69, %s83
      %p85 = scmp.eq.s32.totalorder %s24, 0
      %p86 = por %p84, %p85
      %s88 = sadd.s32 %s87, 1
      %p91 = scmp.eq.s32.totalorder %s18, 1
      %p92 = scmp.ne.s32.totalorder %s87, %s89
      %p93 = scmp.eq.s32.totalorder %s18, 0
      %p94 = por %p92, %p93
      %p95 = scmp.ne.s32.totalorder %s87, %s89
      %p96 = scmp.eq.s32.totalorder %s23, 1
      %p97 = por %p95, %p96
      %p98 = scmp.ne.s32.totalorder %s89, %s90
      %p99 = scmp.eq.s32.totalorder %s23, 0
      %p100 = por %p98, %p99
      %p101 = scmp.ne.s32.totalorder %s89, %s90
      %p102 = scmp.eq.s32.totalorder %s24, 1
      %p103 = por %p101, %p102
      %p105 = scmp.ne.s32.totalorder %s90, %s104
      %p106 = scmp.eq.s32.totalorder %s24, 0
      %p107 = por %p105, %p106
      %s108 = ssub.s32 %s25, %s37
      %s109 = ssub.s32 %s26, %s33
      %s110 = sor.u32 %s108, %s109
      %p111 = scmp.eq.s32.totalorder %s110, 0
      %s113 = sadd.s32 %s112, 1
      %s114 = scalar_select %p111, %s112, %s113
      %p117 = pneg %p111
      %p118 = scmp.eq.s32.totalorder %s18, 1
      %p119 = por %p117, %p118
      %p120 = scmp.ne.s32.totalorder %s112, %s115
      %p121 = scmp.eq.s32.totalorder %s18, 0
      %p122 = por %p120, %p121
      %p123 = scmp.ne.s32.totalorder %s112, %s115
      %p124 = scmp.eq.s32.totalorder %s23, 1
      %p125 = por %p123, %p124
      %p126 = scmp.ne.s32.totalorder %s115, %s116
      %p127 = scmp.eq.s32.totalorder %s23, 0
      %p128 = por %p126, %p127
      %p129 = scmp.ne.s32.totalorder %s115, %s116
      %p130 = scmp.eq.s32.totalorder %s24, 1
      %p131 = por %p129, %p130
      %p133 = scmp.ne.s32.totalorder %s116, %s132
      %p134 = scmp.eq.s32.totalorder %s24, 0
      %p135 = por %p133, %p134
      %s136 = ssub.s32 %s25, %s37
      %p137 = scmp.eq.s32.totalorder %s136, 0
      %s139 = sadd.s32 %s138, 1
      %s140 = scalar_select %p137, %s138, %s139
      %p143 = pneg %p137
      %p144 = scmp.eq.s32.totalorder %s18, 1
      %p145 = por %p143, %p144
      %p146 = scmp.ne.s32.totalorder %s138, %s141
      %p147 = scmp.eq.s32.totalorder %s18, 0
      %p148 = por %p146, %p147
      %p149 = scmp.ne.s32.totalorder %s138, %s141
      %p150 = scmp.eq.s32.totalorder %s23, 1
      %p151 = por %p149, %p150
      %p152 = scmp.ne.s32.totalorder %s141, %s142
      %p153 = scmp.eq.s32.totalorder %s23, 0
      %p154 = por %p152, %p153
      %p155 = scmp.ne.s32.totalorder %s141, %s142
      %p156 = scmp.eq.s32.totalorder %s24, 1
      %p157 = por %p155, %p156
      %p159 = scmp.ne.s32.totalorder %s142, %s158
      %p160 = scmp.eq.s32.totalorder %s24, 0
      %p161 = por %p159, %p160
      %s162 = ssub.s32 %s25, %s37
      %p163 = scmp.eq.s32.totalorder %s162, 0
      %s165 = sadd.s32 %s164, 1
      %s166 = scalar_select %p163, %s164, %s165
      %p169 = pneg %p163
      %p170 = scmp.eq.s32.totalorder %s18, 1
      %p171 = por %p169, %p170
      %p172 = scmp.ne.s32.totalorder %s164, %s167
      %p173 = scmp.eq.s32.totalorder %s18, 0
      %p174 = por %p172, %p173
      %p175 = scmp.ne.s32.totalorder %s164, %s167
      %p176 = scmp.eq.s32.totalorder %s23, 1
      %p177 = por %p175, %p176
      %p178 = scmp.ne.s32.totalorder %s167, %s168
      %p179 = scmp.eq.s32.totalorder %s23, 0
      %p180 = por %p178, %p179
      %p181 = scmp.ne.s32.totalorder %s167, %s168
      %p182 = scmp.eq.s32.totalorder %s24, 1
      %p183 = por %p181, %p182
      %p185 = scmp.ne.s32.totalorder %s168, %s184
      %p186 = scmp.eq.s32.totalorder %s24, 0
      %p187 = por %p185, %p186
      %p188 = scmp.le.s32.totalorder 1, %s18
      %p189 = scmp.lt.s32.totalorder %s18, 3
      %p190 = pnand %p188, %p189
      %p191 = pneg %p190
      // Predicated region
      $region9: #{tpu_custom_call.1} parent=5 // pred_check
        _
      $region10: #{tpu_custom_call.1} parent=5 // pred_check_branch
        %193 = sbr.rel (%p190) target = $region12
      $region11: #{tpu_custom_call.1} parent=5 // pred_region
        %s194 = ssub.s32 %s18, 1
        // Predicated region
        $region13: #{tpu_custom_call.1} parent=11 // pred_check
          %p195 = pneg %p79
        $region14: #{tpu_custom_call.1} parent=11 // pred_check_branch
          %197 = sbr.rel (%p195) target = $region16
        $region15: #{tpu_custom_call.1} parent=11 // pred_region
          _
        $region16: #{tpu_custom_call.1} parent=11 // pred_fallthru
          _
        // Predicated region
        $region17: #{tpu_custom_call.1} parent=11 // pred_check
          %p198 = pneg %p100
        $region18: #{tpu_custom_call.1} parent=11 // pred_check_branch
          %200 = sbr.rel (%p198) target = $region20
        $region19: #{tpu_custom_call.1} parent=11 // pred_region
          _
        $region20: #{tpu_custom_call.1} parent=11 // pred_fallthru
          _
      $region12: #{tpu_custom_call.1} parent=5 // pred_fallthru
        _
      %p201 = scmp.lt.s32.totalorder %s18, 2
      // Predicated region
      $region21: #{tpu_custom_call.1} parent=5 // pred_check
        %p202 = pneg %p201
      $region22: #{tpu_custom_call.1} parent=5 // pred_check_branch
        %204 = sbr.rel (%p202) target = $region24
      $region23: #{tpu_custom_call.1} parent=5 // pred_region
        // Predicated region
        $region25: #{tpu_custom_call.1} parent=23 // pred_check
          %p205 = pneg %p52
        $region26: #{tpu_custom_call.1} parent=23 // pred_check_branch
          %207 = sbr.rel (%p205) target = $region28
        $region27: #{tpu_custom_call.1} parent=23 // pred_region
          %s208 = smul.u32 8, %s26
          %p209 = scmp.lt.s32.totalorder %s25, 1
          %s210 = scalar_select %p209, %s25, 1
          %p211 = scmp.lt.s32.totalorder %s208, 7
          %s212 = scalar_select %p211, %s208, 7
          %s213 = smul.addr %s210, 8
          %s214 = sadd.s32 %s212, %s213
          %s215 = smul.addr %s214, 4
          %s216 = scalar_lea.vmem %s0, %s215
          %s217 = smul.u32 8, %s26
        $region28: #{tpu_custom_call.1} parent=23 // pred_fallthru
          _
      $region24: #{tpu_custom_call.1} parent=5 // pred_fallthru
        _
      %p218 = scmp.le.s32.totalorder 1, %s18
      %p219 = scmp.lt.s32.totalorder %s18, 3
      %p220 = pnand %p218, %p219
      %p221 = pneg %p220
      // Predicated region
      $region29: #{tpu_custom_call.1} parent=5 // pred_check
        _
      $region30: #{tpu_custom_call.1} parent=5 // pred_check_branch
        %223 = sbr.rel (%p220) target = $region32
      $region31: #{tpu_custom_call.1} parent=5 // pred_region
        %s224 = ssub.s32 %s18, 1
        %s225 = smul.u32 8, %s28
        %p226 = scmp.lt.s32.totalorder %s27, 1
        %s227 = scalar_select %p226, %s27, 1
        %p228 = scmp.lt.s32.totalorder %s225, 7
        %s229 = scalar_select %p228, %s225, 7
        %s230 = smul.addr %s227, 8
        %s231 = sadd.s32 %s229, %s230
        %s232 = smul.addr %s231, 4
        %s233 = scalar_lea.vmem %s0, %s232
        %p234 = pneg %p58
        %p235 = pneg %p55
        %p236 = pneg %p79
        %p237 = pneg %p76
        %p238 = pneg %p100
        %p239 = pneg %p97
        %p240 = pneg %p128
        %p241 = pneg %p125
        %s242 = sand.u32 %s115, 1
        %s243 = scalar_lea.sflag [#allocation3], %s242
        %s244 = sand.u32 %s115, 1
        %s245 = smul.addr %s244, 64
        %s246 = scalar_lea.vmem [#allocation2], %s245
        %p247 = pneg %p154
        %p248 = pneg %p151
        %s249 = sand.u32 %s23, 1
        %s250 = scalar_lea.sflag [#allocation5], %s249
        %s251 = sand.u32 %s141, 1
        %s252 = scalar_lea.vmem [#allocation4], %s251
        %p253 = pneg %p180
        %p254 = pneg %p177
        %s255 = sand.u32 %s23, 1
        %s256 = scalar_lea.sflag [#allocation5], %s255
        %s257 = sand.u32 %s167, 1
        %s258 = scalar_lea.vmem [#allocation6], %s257
        %s259 = smul.u32 8, %s28
        %p260 = scmp.lt.s32.totalorder %s27, 1
        %s261 = scalar_select %p260, %s27, 1
        %p262 = scmp.lt.s32.totalorder %s259, 7
        %s263 = scalar_select %p262, %s259, 7
        %s264 = smul.addr %s261, 8
        %s265 = sadd.s32 %s263, %s264
        %s266 = smul.addr %s265, 4
        %s267 = scalar_lea.vmem %s0, %s266
        %s268 = smul.u32 8, %s28
        %s269 = smul.u32 8, %s28
        %p271 = scmp.eq.s32.totalorder %s28, 0
        // Predicated region
        $region33: #{tpu_custom_call.1} parent=31 // pred_check
          %p272 = pneg %p271
        $region34: #{tpu_custom_call.1} parent=31 // pred_check_branch
          %274 = sbr.rel (%p272) target = $region36
        $region35: #{tpu_custom_call.1} parent=31 // pred_region
          %275 = vst [vmem:[%s252] sm:$0x1] 0.0
          %276 = vst [vmem:[%s258] sm:$0x1] 0.0
        $region36: #{tpu_custom_call.1} parent=31 // pred_fallthru
          _
        %v277 = vld [vmem:[%s267] sm:$0xf]
        %v278 = vld [vmem:[%s267 + $0x4] sm:$0xf]
        %v279 = vld [vmem:[%s267 + $0x8] sm:$0xf]
        %v280 = vld [vmem:[%s267 + $0xc] sm:$0xf]
        %v281 = vld [vmem:[%s267 + $0x10] sm:$0xf]
        %v282 = vld [vmem:[%s267 + $0x14] sm:$0xf]
        %v283 = vld [vmem:[%s267 + $0x18] sm:$0xf]
        %v284 = vld [vmem:[%s267 + $0x1c] sm:$0xf]
        %v285 = vld [vmem:[%s1] sm:$0xf]
        %v286 = vld [vmem:[%s1 + $0x4] sm:$0xf]
        %v287 = vld [vmem:[%s1 + $0x8] sm:$0xf]
        %v288 = vld [vmem:[%s1 + $0xc] sm:$0xf]
        %v289 = vld [vmem:[%s1 + $0x10] sm:$0x3]
        %v290 = vld [vmem:[%s2] sm:$0x1]
        %v292 = vlaneseq
        %v293 = vshrl.u32 %v292, 7
        %v294 = vsub.s32 0, %v293
        %v295 = vrot.slane %v290, %v294
        %v305 = vunpack.c.l.b16 %v277
        %v306 = vunpack.c.l.b16 %v278
        %v307 = vunpack.c.l.b16 %v279
        %v308 = vunpack.c.l.b16 %v280
        %v309 = vunpack.c.l.b16 %v281
        %v310 = vunpack.c.l.b16 %v282
        %v311 = vunpack.c.l.b16 %v283
        %v312 = vunpack.c.l.b16 %v284
        %v313 = vpack.c.b16 %v306, %v305
        %v314 = vpack.c.b16 %v308, %v307
        %v315 = vpack.c.b16 %v310, %v309
        %v316 = vpack.c.b16 %v312, %v311
        %v322 = vunpack.c.l.b16 %v285
        %v323 = vunpack.c.l.b16 %v286
        %v324 = vunpack.c.l.b16 %v287
        %v325 = vunpack.c.l.b16 %v288
        %v326 = vunpack.c.l.b16 %v289
        %v327 = vpack.c.b16 %v323, %v322
        %v328 = vpack.c.b16 %v325, %v324
        %v329 = vpack.c.b16 %v326, %v326
        %vm332 = vcmask 293888
        %v334 = vsel %vm332, %v313, 0
        %v337 = vsel %vm332, %v314, 0
        %v340 = vsel %vm332, %v315, 0
        %v343 = vsel %vm332, %v316, 0
        %vm345 = vcmask 1041408
        %v347 = vsel %vm345, %v329, 0
        %349 = vmatprep.subr.bf16.mxu0 0
        %350 = vmatpush1.bf16.msra.mxu0 0
        %351 = vmatprep.subr.bf16.mxu0 0
        %352 = vmatpush1.bf16.msra.mxu0 0
        %353 = vmatprep.subr.bf16.mxu0 0
        %354 = vmatpush1.bf16.msra.mxu0 0
        %355 = vmatprep.subr.bf16.mxu0 0
        %356 = vmatpush1.bf16.msra.mxu0 0
        %357 = vmatprep.subr.bf16.mxu0 0
        %358 = vmatpush1.bf16.msra.mxu0 0
        %359 = vmatprep.subr.bf16.mxu0 0
        %360 = vmatpush1.bf16.msra.mxu0 %v347
        %361 = vmatprep.subr.bf16.mxu0 0
        %362 = vmatpush1.bf16.msra.mxu0 %v328
        %363 = vmatprep.subr.bf16.mxu0 0
        %364 = vmatpush1.bf16.msra.mxu0 %v327
        %365 = vmatprep.subr.bf16.mxu0 0
        %366 = vmatpush2.bf16.msra.mxu0 0
        %367 = vmatprep.subr.bf16.mxu0 0
        %368 = vmatpush2.bf16.msra.mxu0 0
        %369 = vmatprep.subr.bf16.mxu0 0
        %370 = vmatpush2.bf16.msra.mxu0 0
        %371 = vmatprep.subr.bf16.mxu0 0
        %372 = vmatpush2.bf16.msra.mxu0 0
        %373 = vmatprep.subr.bf16.mxu0 0
        %374 = vmatpush2.bf16.msra.mxu0 0
        %375 = vmatprep.subr.bf16.mxu0 0
        %376 = vmatpush2.bf16.msra.mxu0 0
        %377 = vmatprep.subr.bf16.mxu0 0
        %378 = vmatpush2.bf16.msra.mxu0 0
        %379 = vmatprep.subr.bf16.mxu0 0
        %380 = vmatpush2.bf16.msra.mxu0 0
        %381 = vmatprep.mubr.bf16.mxu0 0
        %382 = vmatmul.mubr.bf16.gmra.mxu0 %v334
        %v383 = vpop.f32.mrf.mxu0
        %v384 = vadd.f32 %v295, %v383
        %v385 = vpop.f32.mrf.mxu0
        %v386 = vpop.f32.mrf.mxu0
        %v387 = vadd.f32 %v295, %v386
        %v388 = vpop.f32.mrf.mxu0
        %389 = vmatprep.mubr.bf16.mxu0 0
        %390 = vmatmul.mubr.bf16.gmra.mxu0 %v337
        %v391 = vpop.f32.mrf.mxu0
        %v392 = vadd.f32 %v295, %v391
        %v393 = vpop.f32.mrf.mxu0
        %v394 = vpop.f32.mrf.mxu0
        %v395 = vadd.f32 %v295, %v394
        %v396 = vpop.f32.mrf.mxu0
        %397 = vmatprep.mubr.bf16.mxu0 0
        %398 = vmatmul.mubr.bf16.gmra.mxu0 %v340
        %v399 = vpop.f32.mrf.mxu0
        %v400 = vadd.f32 %v295, %v399
        %v401 = vpop.f32.mrf.mxu0
        %v402 = vpop.f32.mrf.mxu0
        %v403 = vadd.f32 %v295, %v402
        %v404 = vpop.f32.mrf.mxu0
        %405 = vmatprep.mubr.bf16.mxu0 0
        %406 = vmatmul.mubr.bf16.gmra.mxu0 %v343
        %v407 = vpop.f32.mrf.mxu0
        %v408 = vadd.f32 %v295, %v407
        %v409 = vpop.f32.mrf.mxu0
        %v410 = vpop.f32.mrf.mxu0
        %v411 = vadd.f32 %v295, %v410
        %v412 = vpop.f32.mrf.mxu0
        %413 = vdwg.mxu0
        %vm414 = vcmp.gt.f32.partialorder %v384, 0.0
        %vm415 = vcmp.gt.f32.partialorder %v387, 0.0
        %vm416 = vcmp.gt.f32.partialorder %v392, 0.0
        %vm417 = vcmp.gt.f32.partialorder %v395, 0.0
        %vm418 = vcmp.gt.f32.partialorder %v400, 0.0
        %vm419 = vcmp.gt.f32.partialorder %v403, 0.0
        %vm420 = vcmp.gt.f32.partialorder %v408, 0.0
        %vm421 = vcmp.gt.f32.partialorder %v411, 0.0
        %v422 = vmul.f32 %v384, 0.01
        %v423 = vmul.f32 %v387, 0.01
        %v424 = vmul.f32 %v392, 0.01
        %v425 = vmul.f32 %v395, 0.01
        %v426 = vmul.f32 %v400, 0.01
        %v427 = vmul.f32 %v403, 0.01
        %v428 = vmul.f32 %v408, 0.01
        %v429 = vmul.f32 %v411, 0.01
        %v430 = vsel %vm414, %v384, %v422
        %v431 = vsel %vm415, %v387, %v423
        %v432 = vsel %vm416, %v392, %v424
        %v433 = vsel %vm417, %v395, %v425
        %v434 = vsel %vm418, %v400, %v426
        %v435 = vsel %vm419, %v403, %v427
        %v436 = vsel %vm420, %v408, %v428
        %v437 = vsel %vm421, %v411, %v429
        %438 = vst [vmem:[%s246] sm:$0xff] %v430
        %439 = vst [vmem:[%s246 + $0x8] sm:$0xff] %v431
        %440 = vst [vmem:[%s246 + $0x10] sm:$0xff] %v432
        %441 = vst [vmem:[%s246 + $0x18] sm:$0xff] %v433
        %442 = vst [vmem:[%s246 + $0x20] sm:$0xff] %v434
        %443 = vst [vmem:[%s246 + $0x28] sm:$0xff] %v435
        %444 = vst [vmem:[%s246 + $0x30] sm:$0xff] %v436
        %445 = vst [vmem:[%s246 + $0x38] sm:$0xff] %v437
        %v446 = vld [vmem:[%s252] sm:$0x1]
        %v447 = vadd.f32 %v430, %v431
        %v448 = vadd.f32 %v447, %v432
        %v449 = vadd.f32 %v448, %v433
        %v450 = vadd.f32 %v449, %v434
        %v451 = vadd.f32 %v450, %v435
        %v452 = vadd.f32 %v451, %v436
        %v453 = vadd.f32 %v452, %v437
        %v454 = vrot.slane %v453, 4
        %v455 = vadd.f32 %v453, %v454
        %v456 = vrot.slane %v455, 2
        %v457 = vadd.f32 %v455, %v456
        %v458 = vrot.slane %v457, 1
        %v459 = vadd.f32 %v457, %v458
        %v460 = vadd.f32 %v446, %v459
        %461 = vst [vmem:[%s252] sm:$0x1] %v460
        %v462 = vld [vmem:[%s258] sm:$0x1]
        %v463 = vmul.f32 %v430, %v430
        %v464 = vmul.f32 %v431, %v431
        %v465 = vmul.f32 %v432, %v432
        %v466 = vmul.f32 %v433, %v433
        %v467 = vmul.f32 %v434, %v434
        %v468 = vmul.f32 %v435, %v435
        %v469 = vmul.f32 %v436, %v436
        %v470 = vmul.f32 %v437, %v437
        %v471 = vadd.f32 %v463, %v464
        %v472 = vadd.f32 %v471, %v465
        %v473 = vadd.f32 %v472, %v466
        %v474 = vadd.f32 %v473, %v467
        %v475 = vadd.f32 %v474, %v468
        %v476 = vadd.f32 %v475, %v469
        %v477 = vadd.f32 %v476, %v470
        %v478 = vrot.slane %v477, 4
        %v479 = vadd.f32 %v477, %v478
        %v480 = vrot.slane %v479, 2
        %v481 = vadd.f32 %v479, %v480
        %v482 = vrot.slane %v481, 1
        %v483 = vadd.f32 %v481, %v482
        %v484 = vadd.f32 %v462, %v483
        %485 = vst [vmem:[%s258] sm:$0x1] %v484
        %s486 = sand.u32 %s115, 1
        %s487 = scalar_lea.sflag [#allocation3], %s486
        %s488 = sand.u32 %s115, 1
        %s489 = smul.addr %s488, 64
        %s490 = scalar_lea.vmem [#allocation2], %s489
        %s491 = sand.u32 %s23, 1
        %s492 = scalar_lea.sflag [#allocation5], %s491
        %s493 = sand.u32 %s141, 1
        %s494 = scalar_lea.vmem [#allocation4], %s493
        %s495 = sand.u32 %s23, 1
        %s496 = scalar_lea.sflag [#allocation5], %s495
        %s497 = sand.u32 %s167, 1
        %s498 = scalar_lea.vmem [#allocation6], %s497
        // Predicated region
        $region37: #{tpu_custom_call.1} parent=31 // pred_check
          %p499 = pneg %p125
        $region38: #{tpu_custom_call.1} parent=31 // pred_check_branch
          %501 = sbr.rel (%p499) target = $region40
        $region39: #{tpu_custom_call.1} parent=31 // pred_region
          %s502 = smul.u32 8, %s28
          %s504 = ssub.s32 1024, 1024
          %505 = vsyncadd %s487, %s504
          %s506 = smul.addr %s27, 8
          %s507 = sadd.s32 %s502, %s506
          %s508 = smul.addr %s507, 128
          %s509 = scalar_lea.hbm %s3, %s508
          %s510 = sshll.u32 %s490, 4
          %s511 = int_to_ptr.vmem [resolvable:$true] %s510
          %516 = dma.vmem_to_hbm [thread:$0]  %s511, 1024, %s509, %s487, 128, 128, 8
        $region40: #{tpu_custom_call.1} parent=31 // pred_fallthru
          _
        // Predicated region
        $region41: #{tpu_custom_call.1} parent=31 // pred_check
          %p517 = pneg %p151
        $region42: #{tpu_custom_call.1} parent=31 // pred_check_branch
          %519 = sbr.rel (%p517) target = $region44
        $region43: #{tpu_custom_call.1} parent=31 // pred_region
          %s521 = ssub.s32 16, 16
          %522 = vsyncadd %s492, %s521
          %s523 = smul.addr %s27, 16
          %s524 = scalar_lea.hbm %s4, %s523
          %s526 = sshll.u32 %s494, 4
          %s527 = int_to_ptr.vmem [resolvable:$true] %s526
          %529 = dma.vmem_to_hbm [thread:$0]  %s527, 16, %s524, %s492
        $region44: #{tpu_custom_call.1} parent=31 // pred_fallthru
          _
        // Predicated region
        $region45: #{tpu_custom_call.1} parent=31 // pred_check
          %p530 = pneg %p177
        $region46: #{tpu_custom_call.1} parent=31 // pred_check_branch
          %532 = sbr.rel (%p530) target = $region48
        $region47: #{tpu_custom_call.1} parent=31 // pred_region
          %s534 = ssub.s32 16, 16
          %535 = vsyncadd %s496, %s534
          %s536 = smul.addr %s27, 16
          %s537 = scalar_lea.hbm %s5, %s536
          %s539 = sshll.u32 %s498, 4
          %s540 = int_to_ptr.vmem [resolvable:$true] %s539
          %542 = dma.vmem_to_hbm [thread:$0]  %s540, 16, %s537, %s496
        $region48: #{tpu_custom_call.1} parent=31 // pred_fallthru
          _
      $region32: #{tpu_custom_call.1} parent=5 // pred_fallthru
        _
      %p543 = scmp.le.s32.totalorder 2, %s18
      // Predicated region
      $region49: #{tpu_custom_call.1} parent=5 // pred_check
        %p544 = pneg %p543
      $region50: #{tpu_custom_call.1} parent=5 // pred_check_branch
        %546 = sbr.rel (%p544) target = $region52
      $region51: #{tpu_custom_call.1} parent=5 // pred_region
        %s547 = ssub.s32 %s18, 2
        // Predicated region
        $region53: #{tpu_custom_call.1} parent=51 // pred_check
          %p548 = pneg %p131
        $region54: #{tpu_custom_call.1} parent=51 // pred_check_branch
          %550 = sbr.rel (%p548) target = $region56
        $region55: #{tpu_custom_call.1} parent=51 // pred_region
          %s551 = sand.u32 %s116, 1
          %s552 = scalar_lea.sflag [#allocation3], %s551
          %s553 = sand.u32 %s116, 1
          %s554 = smul.addr %s553, 64
          %s555 = scalar_lea.vmem [#allocation2], %s554
          %556 = dma.done %s552, 1024
        $region56: #{tpu_custom_call.1} parent=51 // pred_fallthru
          _
        // Predicated region
        $region57: #{tpu_custom_call.1} parent=51 // pred_check
          %p557 = pneg %p157
        $region58: #{tpu_custom_call.1} parent=51 // pred_check_branch
          %559 = sbr.rel (%p557) target = $region60
        $region59: #{tpu_custom_call.1} parent=51 // pred_region
          %s560 = sand.u32 %s24, 1
          %s561 = scalar_lea.sflag [#allocation5], %s560
          %s562 = sand.u32 %s142, 1
          %s563 = scalar_lea.vmem [#allocation4], %s562
          %564 = dma.done %s561, 16
        $region60: #{tpu_custom_call.1} parent=51 // pred_fallthru
          _
        // Predicated region
        $region61: #{tpu_custom_call.1} parent=51 // pred_check
          %p565 = pneg %p183
        $region62: #{tpu_custom_call.1} parent=51 // pred_check_branch
          %567 = sbr.rel (%p565) target = $region64
        $region63: #{tpu_custom_call.1} parent=51 // pred_region
          %s568 = sand.u32 %s24, 1
          %s569 = scalar_lea.sflag [#allocation5], %s568
          %s570 = sand.u32 %s168, 1
          %s571 = scalar_lea.vmem [#allocation6], %s570
          %572 = dma.done %s569, 16
        $region64: #{tpu_custom_call.1} parent=51 // pred_fallthru
          _
      $region52: #{tpu_custom_call.1} parent=5 // pred_fallthru
        _
    $region6: #{tpu_custom_call.1} parent=1 // loop_footer
      %s22 = sadd.s32 1, %s18
    $region7: #{tpu_custom_call.1} parent=1 // loop_footer_branch
      %17 = sbr.rel target = $region3
    $region8: #{tpu_custom_call.1} parent=1 // loop_exit
      _
    %573 = vsyncpa [#allocation3], 1
    %s574 = scalar_lea.sflag [#allocation3], 1
    %575 = vsyncpa %s574, 1
    %576 = vsyncpa [#allocation5], 1
    %s577 = scalar_lea.sflag [#allocation5], 1
    %578 = vsyncpa %s577, 1

</llo_original>
